<compile_context>
chip_gen: v7x
topology: tpu7x:2x2x1
jax: 0.10.0
libtpu: 0.0.40
codegen_flags: <defaults>
</compile_context>

<pallas_src>
import functools

import jax
import jax.numpy as jnp
from jax.experimental import pallas as pl
from jax.experimental.pallas import tpu as pltpu


def _softq_kernel(n_hidden, s_ref, a_ref, w1s_ref, w1a_ref, b1_ref,
                  w2_ref, b2_ref, w3_ref, b3_ref, o_ref):
    # linear1 split over the [state, action] concat (bf16 operands, f32 acc).
    h = (jnp.dot(s_ref[...], w1s_ref[...], preferred_element_type=jnp.float32)
         + jnp.dot(a_ref[...], w1a_ref[...], preferred_element_type=jnp.float32)
         + b1_ref[...])
    h = jnp.maximum(h, 0.0)

    # linear2: n_hidden x (Linear -> ReLU). Static unroll is fine for small
    # n_hidden; switch to lax.fori_loop(..., unroll=True) over the leading axis
    # of w2_ref/b2_ref if n_hidden grows beyond ~4 (bounds vreg live ranges).
    for i in range(n_hidden):
        h = jnp.dot(h.astype(jnp.bfloat16), w2_ref[i],
                    preferred_element_type=jnp.float32) + b2_ref[i]
        h = jnp.maximum(h, 0.0)

    # linear3 (no activation).
    o_ref[...] = (jnp.dot(h.astype(jnp.bfloat16), w3_ref[...],
                          preferred_element_type=jnp.float32) + b3_ref[...])


def soft_q_forward(state, action, kernel_params, n_hidden, *, block_rows=512):
    """state: (B, state_dim), action: (B, action_dim) -> (B, 1) float32."""
    w1s, w1a, b1, w2, b2, w3, b3 = kernel_params
    B, state_dim = state.shape
    action_dim = action.shape[1]

    # bf16 MXU operands (halves streamed x bytes); biases / accum stay f32.
    state = state.astype(jnp.bfloat16)
    action = action.astype(jnp.bfloat16)

    # Row tile: whole batch when small, otherwise block_rows (multiple of 16
    # for bf16 sublane packing). Partial trailing blocks are handled by Pallas.
    # NOTE(v7x): if layer_dim is ever scaled up, re-derive block_rows for the
    # 64 MiB VMEM (or raise vmem_limit_bytes via pltpu.CompilerParams).
    tm = B if B <= block_rows else block_rows
    grid = (pl.cdiv(B, tm),)

    rows = lambda i: (i, 0)          # streamed operands: tile i along batch
    resident2 = lambda i: (0, 0)     # 2-D weights/biases: resident in VMEM
    resident3 = lambda i: (0, 0, 0)  # 3-D stacked hidden weights/biases

    kernel = functools.partial(_softq_kernel, n_hidden)
    return pl.pallas_call(
        kernel,
        grid=grid,
        in_specs=[
            pl.BlockSpec((tm, state_dim), rows),
            pl.BlockSpec((tm, action_dim), rows),
            pl.BlockSpec(w1s.shape, resident2),
            pl.BlockSpec(w1a.shape, resident2),
            pl.BlockSpec(b1.shape, resident2),
            pl.BlockSpec(w2.shape, resident3),
            pl.BlockSpec(b2.shape, resident3),
            pl.BlockSpec(w3.shape, resident2),
            pl.BlockSpec(b3.shape, resident2),
        ],
        out_specs=pl.BlockSpec((tm, 1), rows),
        out_shape=jax.ShapeDtypeStruct((B, 1), jnp.float32),
        compiler_params=pltpu.CompilerParams(
            dimension_semantics=("parallel",)),
    )(state, action, w1s, w1a, b1, w2, b2, w3, b3)


def init_params(key, state_dim, action_dim, layer_dim, n_hidden=1,
                init_w=0.003):
    """f32 params mimicking nn.Linear defaults (uniform +/- 1/sqrt(fan_in))
    and the explicit uniform(-init_w, init_w) for linear3."""
    in_dim = state_dim + action_dim
    ks = jax.random.split(key, 6)

    def lin_init(kw, kb, fan_in, fan_out):
        bound = 1.0 / jnp.sqrt(jnp.float32(fan_in))
        w = jax.random.uniform(kw, (fan_in, fan_out), jnp.float32,
                               minval=-bound, maxval=bound)
        b = jax.random.uniform(kb, (1, fan_out), jnp.float32,
                               minval=-bound, maxval=bound)
        return w, b

    w1, b1 = lin_init(ks[0], ks[1], in_dim, layer_dim)

    w2_list, b2_list = [], []
    kh = jax.random.split(ks[2], 2 * max(n_hidden, 1))
    for i in range(n_hidden):
        wi, bi = lin_init(kh[2 * i], kh[2 * i + 1], layer_dim, layer_dim)
        w2_list.append(wi)
        b2_list.append(bi)
    w2 = jnp.stack(w2_list, axis=0)          # (n_hidden, H, H)
    b2 = jnp.stack(b2_list, axis=0)          # (n_hidden, 1, H)

    w3 = jax.random.uniform(ks[3], (layer_dim, 1), jnp.float32,
                            minval=-init_w, maxval=init_w)
    b3 = jax.random.uniform(ks[4], (1, 1), jnp.float32,
                            minval=-init_w, maxval=init_w)
    return (w1, b1, w2, b2, w3, b3)


def prepare_kernel_params(params, state_dim):
    """Split W1 over the [state|action] concat and cast weights to bf16."""
    w1, b1, w2, b2, w3, b3 = params
    bf = jnp.bfloat16
    w1s = w1[:state_dim, :].astype(bf)       # (state_dim, H)
    w1a = w1[state_dim:, :].astype(bf)       # (action_dim, H)
    return (w1s, w1a, b1.astype(jnp.float32),
            w2.astype(bf), b2.astype(jnp.float32),
            w3.astype(bf), b3.astype(jnp.float32))


def reference_forward(state, action, params, n_hidden):
    """Plain-JAX reference with the same bf16-operand / f32-accumulate
    numerics as the kernel."""
    w1, b1, w2, b2, w3, b3 = params
    bf = jnp.bfloat16
    x = jnp.concatenate([state, action], axis=1)
    h = jnp.dot(x.astype(bf), w1.astype(bf),
                preferred_element_type=jnp.float32) + b1
    h = jnp.maximum(h, 0.0)
    for i in range(n_hidden):
        h = jnp.dot(h.astype(bf), w2[i].astype(bf),
                    preferred_element_type=jnp.float32) + b2[i]
        h = jnp.maximum(h, 0.0)
    return jnp.dot(h.astype(bf), w3.astype(bf),
                   preferred_element_type=jnp.float32) + b3


if __name__ == "__main__":
    batch = 256          # small, but > block_rows below -> exercises the grid
    state_dim = 12
    action_dim = 4
    layer_dim = 32
    n_hidden = 1

    key = jax.random.PRNGKey(0)
    k_state, k_action, k_params = jax.random.split(key, 3)
    state = jax.random.normal(k_state, (batch, state_dim), jnp.float32)
    action = jax.random.normal(k_action, (batch, action_dim), jnp.float32)

    params = init_params(k_params, state_dim, action_dim, layer_dim, n_hidden)
    kparams = prepare_kernel_params(params, state_dim)

    out = soft_q_forward(state, action, kparams, n_hidden, block_rows=128)
    out = jax.block_until_ready(out)

    ref = reference_forward(state, action, params, n_hidden)
    assert out.shape == (batch, 1)
    assert jnp.allclose(out, ref, atol=1e-3, rtol=1e-3), \
        float(jnp.max(jnp.abs(out - ref)))
    print("KERNEL_OK")
</pallas_src>

<mosaic_0001>
module attributes {stable_mosaic.version = 11 : i64} {
  func.func @_softq_kernel(%arg0: i32, %arg1: memref<128x12xbf16, #tpu.memory_space<vmem>>, %arg2: memref<128x4xbf16, #tpu.memory_space<vmem>>, %arg3: memref<12x32xbf16, #tpu.memory_space<vmem>>, %arg4: memref<4x32xbf16, #tpu.memory_space<vmem>>, %arg5: memref<1x32xf32, #tpu.memory_space<vmem>>, %arg6: memref<1x32x32xbf16, #tpu.memory_space<vmem>>, %arg7: memref<1x1x32xf32, #tpu.memory_space<vmem>>, %arg8: memref<32x1xbf16, #tpu.memory_space<vmem>>, %arg9: memref<1x1xf32, #tpu.memory_space<vmem>>, %arg10: memref<128x1xf32, #tpu.memory_space<vmem>>) attributes {dimension_semantics = [#tpu.dimension_semantics<parallel>], iteration_bounds = array<i64: 2>, scalar_prefetch = 0 : i64, scratch_operands = 0 : i64, tpu.core_type = #tpu.core_type<tc>, window_params = [{transform_indices = @transform_0, window_bounds = array<i64: 128, 12>}, {transform_indices = @transform_1, window_bounds = array<i64: 128, 4>}, {pipeline_mode = #tpu.pipeline_mode<synchronous>, transform_indices = @transform_2, window_bounds = array<i64: 12, 32>}, {pipeline_mode = #tpu.pipeline_mode<synchronous>, transform_indices = @transform_3, window_bounds = array<i64: 4, 32>}, {pipeline_mode = #tpu.pipeline_mode<synchronous>, transform_indices = @transform_4, window_bounds = array<i64: 1, 32>}, {pipeline_mode = #tpu.pipeline_mode<synchronous>, transform_indices = @transform_5, window_bounds = array<i64: 1, 32, 32>}, {pipeline_mode = #tpu.pipeline_mode<synchronous>, transform_indices = @transform_6, window_bounds = array<i64: 1, 1, 32>}, {pipeline_mode = #tpu.pipeline_mode<synchronous>, transform_indices = @transform_7, window_bounds = array<i64: 32, 1>}, {pipeline_mode = #tpu.pipeline_mode<synchronous>, transform_indices = @transform_8, window_bounds = array<i64: 1, 1>}, {transform_indices = @transform_9, window_bounds = array<i64: 128, 1>}]} {
    %c0 = arith.constant 0 : index
    %c0_0 = arith.constant 0 : index
    %0 = vector.load %arg1[%c0, %c0_0] : memref<128x12xbf16, #tpu.memory_space<vmem>>, vector<128x12xbf16>
    %c0_1 = arith.constant 0 : index
    %c0_2 = arith.constant 0 : index
    %1 = vector.load %arg3[%c0_1, %c0_2] : memref<12x32xbf16, #tpu.memory_space<vmem>>, vector<12x32xbf16>
    %cst = arith.constant dense<0.000000e+00> : vector<128x32xf32>
    %2 = tpu.matmul %0, %1, %cst {dimension_numbers = #tpu.dot_dimension_numbers<[1], [0], [0], [1], [0, 0, 1, 1], [], []>} : vector<128x12xbf16>, vector<12x32xbf16>, vector<128x32xf32> -> vector<128x32xf32>
    %c0_3 = arith.constant 0 : index
    %c0_4 = arith.constant 0 : index
    %3 = vector.load %arg2[%c0_3, %c0_4] : memref<128x4xbf16, #tpu.memory_space<vmem>>, vector<128x4xbf16>
    %c0_5 = arith.constant 0 : index
    %c0_6 = arith.constant 0 : index
    %4 = vector.load %arg4[%c0_5, %c0_6] : memref<4x32xbf16, #tpu.memory_space<vmem>>, vector<4x32xbf16>
    %cst_7 = arith.constant dense<0.000000e+00> : vector<128x32xf32>
    %5 = tpu.matmul %3, %4, %cst_7 {dimension_numbers = #tpu.dot_dimension_numbers<[1], [0], [0], [1], [0, 0, 1, 1], [], []>} : vector<128x4xbf16>, vector<4x32xbf16>, vector<128x32xf32> -> vector<128x32xf32>
    %6 = arith.addf %2, %5 : vector<128x32xf32>
    %c0_8 = arith.constant 0 : index
    %c0_9 = arith.constant 0 : index
    %7 = vector.load %arg5[%c0_8, %c0_9] : memref<1x32xf32, #tpu.memory_space<vmem>>, vector<1x32xf32>
    %8 = vector.broadcast %7 : vector<1x32xf32> to vector<128x32xf32>
    %9 = arith.addf %6, %8 : vector<128x32xf32>
    %cst_10 = arith.constant 0.000000e+00 : f32
    %10 = vector.broadcast %cst_10 : f32 to vector<128x32xf32>
    %11 = arith.maximumf %9, %10 : vector<128x32xf32>
    %12 = arith.truncf %11 : vector<128x32xf32> to vector<128x32xbf16>
    %c0_11 = arith.constant 0 : index
    %c0_12 = arith.constant 0 : index
    %c0_13 = arith.constant 0 : index
    %13 = vector.load %arg6[%c0_11, %c0_12, %c0_13] : memref<1x32x32xbf16, #tpu.memory_space<vmem>>, vector<1x32x32xbf16>
    %14 = vector.shape_cast %13 : vector<1x32x32xbf16> to vector<32x32xbf16>
    %cst_14 = arith.constant dense<0.000000e+00> : vector<128x32xf32>
    %15 = tpu.matmul %12, %14, %cst_14 {dimension_numbers = #tpu.dot_dimension_numbers<[1], [0], [0], [1], [0, 0, 1, 1], [], []>} : vector<128x32xbf16>, vector<32x32xbf16>, vector<128x32xf32> -> vector<128x32xf32>
    %c0_15 = arith.constant 0 : index
    %c0_16 = arith.constant 0 : index
    %c0_17 = arith.constant 0 : index
    %16 = vector.load %arg7[%c0_15, %c0_16, %c0_17] : memref<1x1x32xf32, #tpu.memory_space<vmem>>, vector<1x1x32xf32>
    %17 = vector.shape_cast %16 : vector<1x1x32xf32> to vector<1x32xf32>
    %18 = vector.broadcast %17 : vector<1x32xf32> to vector<128x32xf32>
    %19 = arith.addf %15, %18 : vector<128x32xf32>
    %cst_18 = arith.constant 0.000000e+00 : f32
    %20 = vector.broadcast %cst_18 : f32 to vector<128x32xf32>
    %21 = arith.maximumf %19, %20 : vector<128x32xf32>
    %22 = arith.truncf %21 : vector<128x32xf32> to vector<128x32xbf16>
    %c0_19 = arith.constant 0 : index
    %c0_20 = arith.constant 0 : index
    %23 = vector.load %arg8[%c0_19, %c0_20] : memref<32x1xbf16, #tpu.memory_space<vmem>>, vector<32x1xbf16>
    %cst_21 = arith.constant dense<0.000000e+00> : vector<128x1xf32>
    %24 = tpu.matmul %22, %23, %cst_21 {dimension_numbers = #tpu.dot_dimension_numbers<[1], [0], [0], [1], [0, 0, 1, 1], [], []>} : vector<128x32xbf16>, vector<32x1xbf16>, vector<128x1xf32> -> vector<128x1xf32>
    %c0_22 = arith.constant 0 : index
    %c0_23 = arith.constant 0 : index
    %25 = vector.load %arg9[%c0_22, %c0_23] : memref<1x1xf32, #tpu.memory_space<vmem>>, vector<1x1xf32>
    %26 = vector.broadcast %25 : vector<1x1xf32> to vector<128x1xf32>
    %27 = arith.addf %24, %26 : vector<128x1xf32>
    %c0_24 = arith.constant 0 : index
    %c0_25 = arith.constant 0 : index
    %28 = vector.load %arg10[%c0_24, %c0_25] : memref<128x1xf32, #tpu.memory_space<vmem>>, vector<128x1xf32>
    tpu.vector_store %arg10[%c0_24, %c0_25], %27 {strides = array<i32>} : memref<128x1xf32, #tpu.memory_space<vmem>>, vector<128x1xf32>,
    return
  }
  func.func @transform_0(%arg0: i32) -> (i32, i32) {
    %c0_i32 = arith.constant 0 : i32
    %c0_i32_0 = arith.constant 0 : i32
    return %arg0, %c0_i32 : i32, i32
  }
  func.func @transform_1(%arg0: i32) -> (i32, i32) {
    %c0_i32 = arith.constant 0 : i32
    %c0_i32_0 = arith.constant 0 : i32
    return %arg0, %c0_i32 : i32, i32
  }
  func.func @transform_2(%arg0: i32) -> (i32, i32) {
    %c0_i32 = arith.constant 0 : i32
    %c0_i32_0 = arith.constant 0 : i32
    %c0_i32_1 = arith.constant 0 : i32
    return %c0_i32, %c0_i32_0 : i32, i32
  }
  func.func @transform_3(%arg0: i32) -> (i32, i32) {
    %c0_i32 = arith.constant 0 : i32
    %c0_i32_0 = arith.constant 0 : i32
    %c0_i32_1 = arith.constant 0 : i32
    return %c0_i32, %c0_i32_0 : i32, i32
  }
  func.func @transform_4(%arg0: i32) -> (i32, i32) {
    %c0_i32 = arith.constant 0 : i32
    %c0_i32_0 = arith.constant 0 : i32
    %c0_i32_1 = arith.constant 0 : i32
    return %c0_i32, %c0_i32_0 : i32, i32
  }
  func.func @transform_5(%arg0: i32) -> (i32, i32, i32) {
    %c0_i32 = arith.constant 0 : i32
    %c0_i32_0 = arith.constant 0 : i32
    %c0_i32_1 = arith.constant 0 : i32
    %c0_i32_2 = arith.constant 0 : i32
    return %c0_i32, %c0_i32_0, %c0_i32_1 : i32, i32, i32
  }
  func.func @transform_6(%arg0: i32) -> (i32, i32, i32) {
    %c0_i32 = arith.constant 0 : i32
    %c0_i32_0 = arith.constant 0 : i32
    %c0_i32_1 = arith.constant 0 : i32
    %c0_i32_2 = arith.constant 0 : i32
    return %c0_i32, %c0_i32_0, %c0_i32_1 : i32, i32, i32
  }
  func.func @transform_7(%arg0: i32) -> (i32, i32) {
    %c0_i32 = arith.constant 0 : i32
    %c0_i32_0 = arith.constant 0 : i32
    %c0_i32_1 = arith.constant 0 : i32
    return %c0_i32, %c0_i32_0 : i32, i32
  }
  func.func @transform_8(%arg0: i32) -> (i32, i32) {
    %c0_i32 = arith.constant 0 : i32
    %c0_i32_0 = arith.constant 0 : i32
    %c0_i32_1 = arith.constant 0 : i32
    return %c0_i32, %c0_i32_0 : i32, i32
  }
  func.func @transform_9(%arg0: i32) -> (i32, i32) {
    %c0_i32 = arith.constant 0 : i32
    %c0_i32_0 = arith.constant 0 : i32
    return %arg0, %c0_i32 : i32, i32
  }
}

</mosaic_0001>

<llo_original>
// kernel: tpu_custom_call.1
$region0: #{tpu_custom_call.1}
  #allocation0 [shape = 'u32[]', space=smem, size = 0x4, offset = 0x4, fixed_abs, tag = 'smem constant byte address 0x4 - core index']
  #allocation1 [shape = 'u32[144,128]{1,0:T(1,128)}', space=vmem, size = 0x12000, scoped, tag = 'internal scratch']
  #allocation2 [shape = 'f32[1,1]{1,0:T(1,128)S(1)}', space=vmem, size = 0x200, scoped, tag = 'scoped memory for tpu_custom_call.1']
  %s0 = inlined_call_operand.vmem [shape: bf16[256,12], index: 0, kind: input, shape index: {}]
  %s1 = inlined_call_operand.vmem [shape: bf16[256,4], index: 1, kind: input, shape index: {}]
  %s2 = inlined_call_operand.vmem [shape: bf16[12,32], index: 2, kind: input, shape index: {}]
  %s3 = inlined_call_operand.vmem [shape: bf16[4,32], index: 3, kind: input, shape index: {}]
  %s4 = inlined_call_operand.vmem [shape: f32[1,32], index: 4, kind: input, shape index: {}]
  %s5 = inlined_call_operand.vmem [shape: bf16[1,32,32], index: 5, kind: input, shape index: {}]
  %s6 = inlined_call_operand.vmem [shape: f32[1,1,32], index: 6, kind: input, shape index: {}]
  %s7 = inlined_call_operand.vmem [shape: bf16[32,1], index: 7, kind: input, shape index: {}]
  %s8 = inlined_call_operand.<no memory space> [shape: f32[1,1], index: 8, kind: input, shape index: {}]
  %s9 = inlined_call_operand.vmem [shape: f32[256,1], index: 9, kind: output, shape index: {}]
  %s10 = sld [smem:[#allocation0]]
  $region69: #{tpu_custom_call.1} parent=0
    _
  %s12 = ssub.s32 1, %s10
  %s13 = scalar_select 0, %s12, %s10
  %v14 = vstv %s8
  %15 = vst [vmem:[#allocation2] sm:$0x1] %v14
  loop: start=0, step=1, limit=4
  $region2: #{tpu_custom_call.1} parent=0 // loop_pre_header
    _
  $region3: #{tpu_custom_call.1} parent=0 // loop_header
    %s17 = sphi 0, %s21
    %p18 = scmp.ge.s32.totalorder %s17, 4
    %s27 = sphi 0, %s29
    %s30 = sphi 0, %s27
    %s31 = sphi 0, %s30
    %s47 = sphi 0, %s31
    %s53 = sphi 0, %s55
    %s56 = sphi 0, %s53
    %s57 = sphi 0, %s56
    %s73 = sphi 0, %s57
    %s77 = sphi 0, %s77
    %s79 = sphi 0, %s77
    %s80 = sphi 0, %s79
    %s94 = sphi 0, %s80
    %s98 = sphi 0, %s98
    %s100 = sphi 0, %s98
    %s101 = sphi 0, %s100
    %s115 = sphi 0, %s101
    %s119 = sphi 0, %s119
    %s121 = sphi 0, %s119
    %s122 = sphi 0, %s121
    %s136 = sphi 0, %s122
    %s140 = sphi 0, %s140
    %s142 = sphi 0, %s140
    %s143 = sphi 0, %s142
    %s157 = sphi 0, %s143
    %s161 = sphi 0, %s161
    %s163 = sphi 0, %s161
    %s164 = sphi 0, %s163
    %s178 = sphi 0, %s164
    %s182 = sphi 0, %s182
    %s184 = sphi 0, %s182
    %s185 = sphi 0, %s184
    %s199 = sphi 0, %s185
    %s203 = sphi 0, %s203
    %s205 = sphi 0, %s203
    %s206 = sphi 0, %s205
    %s220 = sphi 0, %s206
    %s226 = sphi 0, %s228
    %s229 = sphi 0, %s226
    %s230 = sphi 0, %s229
    %s246 = sphi 0, %s230
  $region4: #{tpu_custom_call.1} parent=0 // loop_header_branch
    %20 = sbr.rel (%p18) target = $region8
  $region5: #{tpu_custom_call.1} parent=0 // loop_body
    %s22 = ssub.s32 %s17, 1
    %s23 = ssub.s32 %s17, 2
    %s24 = sadd.s32 %s17, 1
    %s25 = ssub.s32 %s17, %s24
    %p26 = scmp.eq.s32.totalorder %s25, 0
    %s28 = sadd.s32 %s27, 1
    %s29 = scalar_select %p26, %s27, %s28
    %p32 = pneg %p26
    %p33 = scmp.eq.s32.totalorder %s17, 1
    %p34 = por %p32, %p33
    %p35 = scmp.ne.s32.totalorder %s27, %s30
    %p36 = scmp.eq.s32.totalorder %s17, 0
    %p37 = por %p35, %p36
    %p38 = scmp.ne.s32.totalorder %s27, %s30
    %p39 = scmp.eq.s32.totalorder %s22, 1
    %p40 = por %p38, %p39
    %p41 = scmp.ne.s32.totalorder %s30, %s31
    %p42 = scmp.eq.s32.totalorder %s22, 0
    %p43 = por %p41, %p42
    %p44 = scmp.ne.s32.totalorder %s30, %s31
    %p45 = scmp.eq.s32.totalorder %s23, 1
    %p46 = por %p44, %p45
    %p48 = scmp.ne.s32.totalorder %s31, %s47
    %p49 = scmp.eq.s32.totalorder %s23, 0
    %p50 = por %p48, %p49
    %s51 = ssub.s32 %s17, %s24
    %p52 = scmp.eq.s32.totalorder %s51, 0
    %s54 = sadd.s32 %s53, 1
    %s55 = scalar_select %p52, %s53, %s54
    %p58 = pneg %p52
    %p59 = scmp.eq.s32.totalorder %s17, 1
    %p60 = por %p58, %p59
    %p61 = scmp.ne.s32.totalorder %s53, %s56
    %p62 = scmp.eq.s32.totalorder %s17, 0
    %p63 = por %p61, %p62
    %p64 = scmp.ne.s32.totalorder %s53, %s56
    %p65 = scmp.eq.s32.totalorder %s22, 1
    %p66 = por %p64, %p65
    %p67 = scmp.ne.s32.totalorder %s56, %s57
    %p68 = scmp.eq.s32.totalorder %s22, 0
    %p69 = por %p67, %p68
    %p70 = scmp.ne.s32.totalorder %s56, %s57
    %p71 = scmp.eq.s32.totalorder %s23, 1
    %p72 = por %p70, %p71
    %p74 = scmp.ne.s32.totalorder %s57, %s73
    %p75 = scmp.eq.s32.totalorder %s23, 0
    %p76 = por %p74, %p75
    %s78 = sadd.s32 %s77, 1
    %p81 = scmp.eq.s32.totalorder %s17, 1
    %p82 = scmp.ne.s32.totalorder %s77, %s79
    %p83 = scmp.eq.s32.totalorder %s17, 0
    %p84 = por %p82, %p83
    %p85 = scmp.ne.s32.totalorder %s77, %s79
    %p86 = scmp.eq.s32.totalorder %s22, 1
    %p87 = por %p85, %p86
    %p88 = scmp.ne.s32.totalorder %s79, %s80
    %p89 = scmp.eq.s32.totalorder %s22, 0
    %p90 = por %p88, %p89
    %p91 = scmp.ne.s32.totalorder %s79, %s80
    %p92 = scmp.eq.s32.totalorder %s23, 1
    %p93 = por %p91, %p92
    %p95 = scmp.ne.s32.totalorder %s80, %s94
    %p96 = scmp.eq.s32.totalorder %s23, 0
    %p97 = por %p95, %p96
    %s99 = sadd.s32 %s98, 1
    %p102 = scmp.eq.s32.totalorder %s17, 1
    %p103 = scmp.ne.s32.totalorder %s98, %s100
    %p104 = scmp.eq.s32.totalorder %s17, 0
    %p105 = por %p103, %p104
    %p106 = scmp.ne.s32.totalorder %s98, %s100
    %p107 = scmp.eq.s32.totalorder %s22, 1
    %p108 = por %p106, %p107
    %p109 = scmp.ne.s32.totalorder %s100, %s101
    %p110 = scmp.eq.s32.totalorder %s22, 0
    %p111 = por %p109, %p110
    %p112 = scmp.ne.s32.totalorder %s100, %s101
    %p113 = scmp.eq.s32.totalorder %s23, 1
    %p114 = por %p112, %p113
    %p116 = scmp.ne.s32.totalorder %s101, %s115
    %p117 = scmp.eq.s32.totalorder %s23, 0
    %p118 = por %p116, %p117
    %s120 = sadd.s32 %s119, 1
    %p123 = scmp.eq.s32.totalorder %s17, 1
    %p124 = scmp.ne.s32.totalorder %s119, %s121
    %p125 = scmp.eq.s32.totalorder %s17, 0
    %p126 = por %p124, %p125
    %p127 = scmp.ne.s32.totalorder %s119, %s121
    %p128 = scmp.eq.s32.totalorder %s22, 1
    %p129 = por %p127, %p128
    %p130 = scmp.ne.s32.totalorder %s121, %s122
    %p131 = scmp.eq.s32.totalorder %s22, 0
    %p132 = por %p130, %p131
    %p133 = scmp.ne.s32.totalorder %s121, %s122
    %p134 = scmp.eq.s32.totalorder %s23, 1
    %p135 = por %p133, %p134
    %p137 = scmp.ne.s32.totalorder %s122, %s136
    %p138 = scmp.eq.s32.totalorder %s23, 0
    %p139 = por %p137, %p138
    %s141 = sadd.s32 %s140, 1
    %p144 = scmp.eq.s32.totalorder %s17, 1
    %p145 = scmp.ne.s32.totalorder %s140, %s142
    %p146 = scmp.eq.s32.totalorder %s17, 0
    %p147 = por %p145, %p146
    %p148 = scmp.ne.s32.totalorder %s140, %s142
    %p149 = scmp.eq.s32.totalorder %s22, 1
    %p150 = por %p148, %p149
    %p151 = scmp.ne.s32.totalorder %s142, %s143
    %p152 = scmp.eq.s32.totalorder %s22, 0
    %p153 = por %p151, %p152
    %p154 = scmp.ne.s32.totalorder %s142, %s143
    %p155 = scmp.eq.s32.totalorder %s23, 1
    %p156 = por %p154, %p155
    %p158 = scmp.ne.s32.totalorder %s143, %s157
    %p159 = scmp.eq.s32.totalorder %s23, 0
    %p160 = por %p158, %p159
    %s162 = sadd.s32 %s161, 1
    %p165 = scmp.eq.s32.totalorder %s17, 1
    %p166 = scmp.ne.s32.totalorder %s161, %s163
    %p167 = scmp.eq.s32.totalorder %s17, 0
    %p168 = por %p166, %p167
    %p169 = scmp.ne.s32.totalorder %s161, %s163
    %p170 = scmp.eq.s32.totalorder %s22, 1
    %p171 = por %p169, %p170
    %p172 = scmp.ne.s32.totalorder %s163, %s164
    %p173 = scmp.eq.s32.totalorder %s22, 0
    %p174 = por %p172, %p173
    %p175 = scmp.ne.s32.totalorder %s163, %s164
    %p176 = scmp.eq.s32.totalorder %s23, 1
    %p177 = por %p175, %p176
    %p179 = scmp.ne.s32.totalorder %s164, %s178
    %p180 = scmp.eq.s32.totalorder %s23, 0
    %p181 = por %p179, %p180
    %s183 = sadd.s32 %s182, 1
    %p186 = scmp.eq.s32.totalorder %s17, 1
    %p187 = scmp.ne.s32.totalorder %s182, %s184
    %p188 = scmp.eq.s32.totalorder %s17, 0
    %p189 = por %p187, %p188
    %p190 = scmp.ne.s32.totalorder %s182, %s184
    %p191 = scmp.eq.s32.totalorder %s22, 1
    %p192 = por %p190, %p191
    %p193 = scmp.ne.s32.totalorder %s184, %s185
    %p194 = scmp.eq.s32.totalorder %s22, 0
    %p195 = por %p193, %p194
    %p196 = scmp.ne.s32.totalorder %s184, %s185
    %p197 = scmp.eq.s32.totalorder %s23, 1
    %p198 = por %p196, %p197
    %p200 = scmp.ne.s32.totalorder %s185, %s199
    %p201 = scmp.eq.s32.totalorder %s23, 0
    %p202 = por %p200, %p201
    %s204 = sadd.s32 %s203, 1
    %p207 = scmp.eq.s32.totalorder %s17, 1
    %p208 = scmp.ne.s32.totalorder %s203, %s205
    %p209 = scmp.eq.s32.totalorder %s17, 0
    %p210 = por %p208, %p209
    %p211 = scmp.ne.s32.totalorder %s203, %s205
    %p212 = scmp.eq.s32.totalorder %s22, 1
    %p213 = por %p211, %p212
    %p214 = scmp.ne.s32.totalorder %s205, %s206
    %p215 = scmp.eq.s32.totalorder %s22, 0
    %p216 = por %p214, %p215
    %p217 = scmp.ne.s32.totalorder %s205, %s206
    %p218 = scmp.eq.s32.totalorder %s23, 1
    %p219 = por %p217, %p218
    %p221 = scmp.ne.s32.totalorder %s206, %s220
    %p222 = scmp.eq.s32.totalorder %s23, 0
    %p223 = por %p221, %p222
    %s224 = ssub.s32 %s17, %s24
    %p225 = scmp.eq.s32.totalorder %s224, 0
    %s227 = sadd.s32 %s226, 1
    %s228 = scalar_select %p225, %s226, %s227
    %p231 = pneg %p225
    %p232 = scmp.eq.s32.totalorder %s17, 1
    %p233 = por %p231, %p232
    %p234 = scmp.ne.s32.totalorder %s226, %s229
    %p235 = scmp.eq.s32.totalorder %s17, 0
    %p236 = por %p234, %p235
    %p237 = scmp.ne.s32.totalorder %s226, %s229
    %p238 = scmp.eq.s32.totalorder %s22, 1
    %p239 = por %p237, %p238
    %p240 = scmp.ne.s32.totalorder %s229, %s230
    %p241 = scmp.eq.s32.totalorder %s22, 0
    %p242 = por %p240, %p241
    %p243 = scmp.ne.s32.totalorder %s229, %s230
    %p244 = scmp.eq.s32.totalorder %s23, 1
    %p245 = por %p243, %p244
    %p247 = scmp.ne.s32.totalorder %s230, %s246
    %p248 = scmp.eq.s32.totalorder %s23, 0
    %p249 = por %p247, %p248
    %p250 = scmp.le.s32.totalorder 1, %s17
    %p251 = scmp.lt.s32.totalorder %s17, 3
    %p252 = pnand %p250, %p251
    %p253 = pneg %p252
    // Predicated region
    $region9: #{tpu_custom_call.1} parent=5 // pred_check
      _
    $region10: #{tpu_custom_call.1} parent=5 // pred_check_branch
      %255 = sbr.rel (%p252) target = $region12
    $region11: #{tpu_custom_call.1} parent=5 // pred_region
      %s256 = ssub.s32 %s17, 1
      // Predicated region
      $region13: #{tpu_custom_call.1} parent=11 // pred_check
        %p257 = pneg %p90
      $region14: #{tpu_custom_call.1} parent=11 // pred_check_branch
        %259 = sbr.rel (%p257) target = $region16
      $region15: #{tpu_custom_call.1} parent=11 // pred_region
        _
      $region16: #{tpu_custom_call.1} parent=11 // pred_fallthru
        _
      // Predicated region
      $region17: #{tpu_custom_call.1} parent=11 // pred_check
        %p260 = pneg %p111
      $region18: #{tpu_custom_call.1} parent=11 // pred_check_branch
        %262 = sbr.rel (%p260) target = $region20
      $region19: #{tpu_custom_call.1} parent=11 // pred_region
        _
      $region20: #{tpu_custom_call.1} parent=11 // pred_fallthru
        _
      // Predicated region
      $region21: #{tpu_custom_call.1} parent=11 // pred_check
        %p263 = pneg %p132
      $region22: #{tpu_custom_call.1} parent=11 // pred_check_branch
        %265 = sbr.rel (%p263) target = $region24
      $region23: #{tpu_custom_call.1} parent=11 // pred_region
        _
      $region24: #{tpu_custom_call.1} parent=11 // pred_fallthru
        _
      // Predicated region
      $region25: #{tpu_custom_call.1} parent=11 // pred_check
        %p266 = pneg %p153
      $region26: #{tpu_custom_call.1} parent=11 // pred_check_branch
        %268 = sbr.rel (%p266) target = $region28
      $region27: #{tpu_custom_call.1} parent=11 // pred_region
        _
      $region28: #{tpu_custom_call.1} parent=11 // pred_fallthru
        _
      // Predicated region
      $region29: #{tpu_custom_call.1} parent=11 // pred_check
        %p269 = pneg %p174
      $region30: #{tpu_custom_call.1} parent=11 // pred_check_branch
        %271 = sbr.rel (%p269) target = $region32
      $region31: #{tpu_custom_call.1} parent=11 // pred_region
        _
      $region32: #{tpu_custom_call.1} parent=11 // pred_fallthru
        _
      // Predicated region
      $region33: #{tpu_custom_call.1} parent=11 // pred_check
        %p272 = pneg %p195
      $region34: #{tpu_custom_call.1} parent=11 // pred_check_branch
        %274 = sbr.rel (%p272) target = $region36
      $region35: #{tpu_custom_call.1} parent=11 // pred_region
        _
      $region36: #{tpu_custom_call.1} parent=11 // pred_fallthru
        _
      // Predicated region
      $region37: #{tpu_custom_call.1} parent=11 // pred_check
        %p275 = pneg %p216
      $region38: #{tpu_custom_call.1} parent=11 // pred_check_branch
        %277 = sbr.rel (%p275) target = $region40
      $region39: #{tpu_custom_call.1} parent=11 // pred_region
        _
      $region40: #{tpu_custom_call.1} parent=11 // pred_fallthru
        _
    $region12: #{tpu_custom_call.1} parent=5 // pred_fallthru
      _
    %p278 = scmp.lt.s32.totalorder %s17, 2
    // Predicated region
    $region41: #{tpu_custom_call.1} parent=5 // pred_check
      %p279 = pneg %p278
    $region42: #{tpu_custom_call.1} parent=5 // pred_check_branch
      %281 = sbr.rel (%p279) target = $region44
    $region43: #{tpu_custom_call.1} parent=5 // pred_region
      // Predicated region
      $region45: #{tpu_custom_call.1} parent=43 // pred_check
        %p282 = pneg %p37
      $region46: #{tpu_custom_call.1} parent=43 // pred_check_branch
        %284 = sbr.rel (%p282) target = $region48
      $region47: #{tpu_custom_call.1} parent=43 // pred_region
        %s285 = smul.u32 16, %s17
        %p286 = scmp.lt.s32.totalorder %s285, 31
        %s287 = scalar_select %p286, %s285, 31
        %s288 = smul.addr %s287, 4
        %s289 = scalar_lea.vmem %s0, %s288
        %s290 = smul.u32 16, %s17
      $region48: #{tpu_custom_call.1} parent=43 // pred_fallthru
        _
      // Predicated region
      $region49: #{tpu_custom_call.1} parent=43 // pred_check
        %p291 = pneg %p63
      $region50: #{tpu_custom_call.1} parent=43 // pred_check_branch
        %293 = sbr.rel (%p291) target = $region52
      $region51: #{tpu_custom_call.1} parent=43 // pred_region
        %s294 = smul.u32 16, %s17
        %p295 = scmp.lt.s32.totalorder %s294, 31
        %s296 = scalar_select %p295, %s294, 31
        %s297 = smul.addr %s296, 4
        %s298 = scalar_lea.vmem %s1, %s297
        %s299 = smul.u32 16, %s17
      $region52: #{tpu_custom_call.1} parent=43 // pred_fallthru
        _
    $region44: #{tpu_custom_call.1} parent=5 // pred_fallthru
      _
    %p300 = scmp.le.s32.totalorder 1, %s17
    %p301 = scmp.lt.s32.totalorder %s17, 3
    %p302 = pnand %p300, %p301
    %p303 = pneg %p302
    // Predicated region
    $region53: #{tpu_custom_call.1} parent=5 // pred_check
      _
    $region54: #{tpu_custom_call.1} parent=5 // pred_check_branch
      %305 = sbr.rel (%p302) target = $region56
    $region55: #{tpu_custom_call.1} parent=5 // pred_region
      %s306 = ssub.s32 %s17, 1
      %s307 = smul.u32 16, %s22
      %p308 = scmp.lt.s32.totalorder %s307, 31
      %s309 = scalar_select %p308, %s307, 31
      %s310 = smul.addr %s309, 4
      %s311 = scalar_lea.vmem %s0, %s310
      %p312 = pneg %p43
      %p313 = pneg %p40
      %s314 = smul.u32 16, %s22
      %p315 = scmp.lt.s32.totalorder %s314, 31
      %s316 = scalar_select %p315, %s314, 31
      %s317 = smul.addr %s316, 4
      %s318 = scalar_lea.vmem %s1, %s317
      %p319 = pneg %p69
      %p320 = pneg %p66
      %p321 = pneg %p90
      %p322 = pneg %p87
      %p323 = pneg %p111
      %p324 = pneg %p108
      %p325 = pneg %p132
      %p326 = pneg %p129
      %p327 = pneg %p153
      %p328 = pneg %p150
      %p329 = pneg %p174
      %p330 = pneg %p171
      %p331 = pneg %p195
      %p332 = pneg %p192
      %p333 = pneg %p216
      %p334 = pneg %p213
      %p335 = pneg %p242
      %p336 = pneg %p239
      %s337 = smul.u32 16, %s22
      %p338 = scmp.lt.s32.totalorder %s337, 31
      %s339 = scalar_select %p338, %s337, 31
      %s340 = smul.addr %s339, 8
      %s341 = scalar_lea.vmem %s9, %s340
      %s342 = smul.u32 16, %s22
      %p343 = scmp.lt.s32.totalorder %s342, 31
      %s344 = scalar_select %p343, %s342, 31
      %s345 = smul.addr %s344, 4
      %s346 = scalar_lea.vmem %s0, %s345
      %s347 = smul.u32 16, %s22
      %s348 = smul.u32 16, %s22
      %p349 = scmp.lt.s32.totalorder %s348, 31
      %s350 = scalar_select %p349, %s348, 31
      %s351 = smul.addr %s350, 4
      %s352 = scalar_lea.vmem %s1, %s351
      %s353 = smul.u32 16, %s22
      %s354 = smul.u32 16, %s22
      %p355 = scmp.lt.s32.totalorder %s354, 31
      %s356 = scalar_select %p355, %s354, 31
      %s357 = smul.addr %s356, 8
      %s358 = scalar_lea.vmem %s9, %s357
      %s359 = smul.u32 16, %s22
      %v361 = vld [vmem:[%s346] sm:$0xf]
      %v362 = vld [vmem:[%s346 + $0x4] sm:$0xf]
      %v363 = vld [vmem:[%s346 + $0x8] sm:$0xf]
      %v364 = vld [vmem:[%s346 + $0xc] sm:$0xf]
      %v365 = vld [vmem:[%s346 + $0x10] sm:$0xf]
      %v366 = vld [vmem:[%s346 + $0x14] sm:$0xf]
      %v367 = vld [vmem:[%s346 + $0x18] sm:$0xf]
      %v368 = vld [vmem:[%s346 + $0x1c] sm:$0xf]
      %v369 = vld [vmem:[%s346 + $0x20] sm:$0xf]
      %v370 = vld [vmem:[%s346 + $0x24] sm:$0xf]
      %v371 = vld [vmem:[%s346 + $0x28] sm:$0xf]
      %v372 = vld [vmem:[%s346 + $0x2c] sm:$0xf]
      %v373 = vld [vmem:[%s346 + $0x30] sm:$0xf]
      %v374 = vld [vmem:[%s346 + $0x34] sm:$0xf]
      %v375 = vld [vmem:[%s346 + $0x38] sm:$0xf]
      %v376 = vld [vmem:[%s346 + $0x3c] sm:$0xf]
      %v377 = vld [vmem:[%s2] sm:$0xf]
      %v378 = vld [vmem:[%s2 + $0x4] sm:$0x3]
      %v379 = vld [vmem:[%s352] sm:$0xf]
      %v380 = vld [vmem:[%s352 + $0x4] sm:$0xf]
      %v381 = vld [vmem:[%s352 + $0x8] sm:$0xf]
      %v382 = vld [vmem:[%s352 + $0xc] sm:$0xf]
      %v383 = vld [vmem:[%s352 + $0x10] sm:$0xf]
      %v384 = vld [vmem:[%s352 + $0x14] sm:$0xf]
      %v385 = vld [vmem:[%s352 + $0x18] sm:$0xf]
      %v386 = vld [vmem:[%s352 + $0x1c] sm:$0xf]
      %v387 = vld [vmem:[%s352 + $0x20] sm:$0xf]
      %v388 = vld [vmem:[%s352 + $0x24] sm:$0xf]
      %v389 = vld [vmem:[%s352 + $0x28] sm:$0xf]
      %v390 = vld [vmem:[%s352 + $0x2c] sm:$0xf]
      %v391 = vld [vmem:[%s352 + $0x30] sm:$0xf]
      %v392 = vld [vmem:[%s352 + $0x34] sm:$0xf]
      %v393 = vld [vmem:[%s352 + $0x38] sm:$0xf]
      %v394 = vld [vmem:[%s352 + $0x3c] sm:$0xf]
      %v395 = vld [vmem:[%s3] sm:$0x3]
      %v412 = vunpack.c.l.b16 %v379
      %v413 = vunpack.c.l.b16 %v380
      %v414 = vunpack.c.l.b16 %v381
      %v415 = vunpack.c.l.b16 %v382
      %v416 = vunpack.c.l.b16 %v383
      %v417 = vunpack.c.l.b16 %v384
      %v418 = vunpack.c.l.b16 %v385
      %v419 = vunpack.c.l.b16 %v386
      %v420 = vunpack.c.l.b16 %v387
      %v421 = vunpack.c.l.b16 %v388
      %v422 = vunpack.c.l.b16 %v389
      %v423 = vunpack.c.l.b16 %v390
      %v424 = vunpack.c.l.b16 %v391
      %v425 = vunpack.c.l.b16 %v392
      %v426 = vunpack.c.l.b16 %v393
      %v427 = vunpack.c.l.b16 %v394
      %v428 = vpack.c.b16 %v413, %v412
      %v429 = vpack.c.b16 %v415, %v414
      %v430 = vpack.c.b16 %v417, %v416
      %v431 = vpack.c.b16 %v419, %v418
      %v432 = vpack.c.b16 %v421, %v420
      %v433 = vpack.c.b16 %v423, %v422
      %v434 = vpack.c.b16 %v425, %v424
      %v435 = vpack.c.b16 %v427, %v426
      %vm436 = vcmask 31744
      %v438 = vsel %vm436, %v428, 0
      %v441 = vsel %vm436, %v429, 0
      %v444 = vsel %vm436, %v430, 0
      %v447 = vsel %vm436, %v431, 0
      %v450 = vsel %vm436, %v432, 0
      %v453 = vsel %vm436, %v433, 0
      %v456 = vsel %vm436, %v434, 0
      %v459 = vsel %vm436, %v435, 0
      %vm461 = vcmask 1041408
      %v463 = vsel %vm461, %v395, 0
      %465 = vmatprep.subr.bf16.mxu0 0
      %466 = vmatpush1.bf16.msra.mxu0 %v463
      %467 = vmatprep.subr.bf16.mxu0 0
      %468 = vmatpush1.bf16.msra.mxu0 0
      %469 = vmatprep.subr.bf16.mxu0 0
      %470 = vmatpush1.bf16.msra.mxu0 0
      %471 = vmatprep.subr.bf16.mxu0 0
      %472 = vmatpush1.bf16.msra.mxu0 0
      %473 = vmatprep.subr.bf16.mxu0 0
      %474 = vmatpush1.bf16.msra.mxu0 0
      %475 = vmatprep.subr.bf16.mxu0 0
      %476 = vmatpush1.bf16.msra.mxu0 0
      %477 = vmatprep.subr.bf16.mxu0 0
      %478 = vmatpush1.bf16.msra.mxu0 0
      %479 = vmatprep.subr.bf16.mxu0 0
      %480 = vmatpush1.bf16.msra.mxu0 0
      %481 = vmatprep.subr.bf16.mxu0 0
      %482 = vmatpush1.bf16.msra.mxu0 0
      %483 = vmatprep.subr.bf16.mxu0 0
      %484 = vmatpush1.bf16.msra.mxu0 0
      %485 = vmatprep.subr.bf16.mxu0 0
      %486 = vmatpush1.bf16.msra.mxu0 0
      %487 = vmatprep.subr.bf16.mxu0 0
      %488 = vmatpush1.bf16.msra.mxu0 0
      %489 = vmatprep.subr.bf16.mxu0 0
      %490 = vmatpush1.bf16.msra.mxu0 0
      %491 = vmatprep.subr.bf16.mxu0 0
      %492 = vmatpush1.bf16.msra.mxu0 0
      %493 = vmatprep.subr.bf16.mxu0 0
      %494 = vmatpush1.bf16.msra.mxu0 0
      %495 = vmatprep.subr.bf16.mxu0 0
      %496 = vmatpush1.bf16.msra.mxu0 0
      %497 = vmatprep.mubr.bf16.mxu0 0
      %498 = vmatmul.mubr.bf16.gmra.mrb[0].mxu0 %v438
      %v499 = vpop.f32.mrb[0].mxu0
      %v500 = vadd.f32 0.0, %v499
      %v501 = vpop.f32.mrb[0].mxu0
      %v502 = vpop.f32.mrb[0].mxu0
      %v503 = vadd.f32 0.0, %v502
      %v504 = vpop.f32.mrb[0].mxu0
      %505 = vmatprep.mubr.bf16.mxu0 0
      %506 = vmatmul.mubr.bf16.gmra.mrb[0].mxu0 %v441
      %v507 = vpop.f32.mrb[0].mxu0
      %v508 = vadd.f32 0.0, %v507
      %v509 = vpop.f32.mrb[0].mxu0
      %v510 = vpop.f32.mrb[0].mxu0
      %v511 = vadd.f32 0.0, %v510
      %v512 = vpop.f32.mrb[0].mxu0
      %513 = vmatprep.mubr.bf16.mxu0 0
      %514 = vmatmul.mubr.bf16.gmra.mrb[0].mxu0 %v444
      %v515 = vpop.f32.mrb[0].mxu0
      %v516 = vadd.f32 0.0, %v515
      %v517 = vpop.f32.mrb[0].mxu0
      %v518 = vpop.f32.mrb[0].mxu0
      %v519 = vadd.f32 0.0, %v518
      %v520 = vpop.f32.mrb[0].mxu0
      %521 = vmatprep.mubr.bf16.mxu0 0
      %522 = vmatmul.mubr.bf16.gmra.mrb[0].mxu0 %v447
      %v523 = vpop.f32.mrb[0].mxu0
      %v524 = vadd.f32 0.0, %v523
      %v525 = vpop.f32.mrb[0].mxu0
      %v526 = vpop.f32.mrb[0].mxu0
      %v527 = vadd.f32 0.0, %v526
      %v528 = vpop.f32.mrb[0].mxu0
      %529 = vmatprep.mubr.bf16.mxu0 0
      %530 = vmatmul.mubr.bf16.gmra.mrb[0].mxu0 %v450
      %v531 = vpop.f32.mrb[0].mxu0
      %v532 = vadd.f32 0.0, %v531
      %v533 = vpop.f32.mrb[0].mxu0
      %v534 = vpop.f32.mrb[0].mxu0
      %v535 = vadd.f32 0.0, %v534
      %v536 = vpop.f32.mrb[0].mxu0
      %537 = vmatprep.mubr.bf16.mxu0 0
      %538 = vmatmul.mubr.bf16.gmra.mrb[0].mxu0 %v453
      %v539 = vpop.f32.mrb[0].mxu0
      %v540 = vadd.f32 0.0, %v539
      %v541 = vpop.f32.mrb[0].mxu0
      %v542 = vpop.f32.mrb[0].mxu0
      %v543 = vadd.f32 0.0, %v542
      %v544 = vpop.f32.mrb[0].mxu0
      %545 = vmatprep.mubr.bf16.mxu0 0
      %546 = vmatmul.mubr.bf16.gmra.mrb[0].mxu0 %v456
      %v547 = vpop.f32.mrb[0].mxu0
      %v548 = vadd.f32 0.0, %v547
      %v549 = vpop.f32.mrb[0].mxu0
      %v550 = vpop.f32.mrb[0].mxu0
      %v551 = vadd.f32 0.0, %v550
      %v552 = vpop.f32.mrb[0].mxu0
      %553 = vmatprep.mubr.bf16.mxu0 0
      %554 = vmatmul.mubr.bf16.gmra.mrb[0].mxu0 %v459
      %v555 = vpop.f32.mrb[0].mxu0
      %v556 = vadd.f32 0.0, %v555
      %v557 = vpop.f32.mrb[0].mxu0
      %v558 = vpop.f32.mrb[0].mxu0
      %v559 = vadd.f32 0.0, %v558
      %v560 = vpop.f32.mrb[0].mxu0
      %561 = vdwg.mxu0
      %v578 = vunpack.c.l.b16 %v361
      %v579 = vunpack.c.l.b16 %v362
      %v580 = vunpack.c.l.b16 %v363
      %v581 = vunpack.c.l.b16 %v364
      %v582 = vunpack.c.l.b16 %v365
      %v583 = vunpack.c.l.b16 %v366
      %v584 = vunpack.c.l.b16 %v367
      %v585 = vunpack.c.l.b16 %v368
      %v586 = vunpack.c.l.b16 %v369
      %v587 = vunpack.c.l.b16 %v370
      %v588 = vunpack.c.l.b16 %v371
      %v589 = vunpack.c.l.b16 %v372
      %v590 = vunpack.c.l.b16 %v373
      %v591 = vunpack.c.l.b16 %v374
      %v592 = vunpack.c.l.b16 %v375
      %v593 = vunpack.c.l.b16 %v376
      %v594 = vpack.c.b16 %v579, %v578
      %v595 = vpack.c.b16 %v581, %v580
      %v596 = vpack.c.b16 %v583, %v582
      %v597 = vpack.c.b16 %v585, %v584
      %v598 = vpack.c.b16 %v587, %v586
      %v599 = vpack.c.b16 %v589, %v588
      %v600 = vpack.c.b16 %v591, %v590
      %v601 = vpack.c.b16 %v593, %v592
      %v604 = vunpack.c.l.b16 %v377
      %v605 = vunpack.c.l.b16 %v378
      %v606 = vpack.c.b16 %v605, %v604
      %vm607 = vcmask 97280
      %v609 = vsel %vm607, %v594, 0
      %v612 = vsel %vm607, %v595, 0
      %v615 = vsel %vm607, %v596, 0
      %v618 = vsel %vm607, %v597, 0
      %v621 = vsel %vm607, %v598, 0
      %v624 = vsel %vm607, %v599, 0
      %v627 = vsel %vm607, %v600, 0
      %v630 = vsel %vm607, %v601, 0
      %vm632 = vcmask 1045504
      %v634 = vsel %vm632, %v606, 0
      %636 = vmatprep.subr.bf16.mxu0 0
      %637 = vmatpush1.bf16.msra.mxu0 %v634
      %638 = vmatprep.subr.bf16.mxu0 0
      %639 = vmatpush1.bf16.msra.mxu0 0
      %640 = vmatprep.subr.bf16.mxu0 0
      %641 = vmatpush1.bf16.msra.mxu0 0
      %642 = vmatprep.subr.bf16.mxu0 0
      %643 = vmatpush1.bf16.msra.mxu0 0
      %644 = vmatprep.subr.bf16.mxu0 0
      %645 = vmatpush1.bf16.msra.mxu0 0
      %646 = vmatprep.subr.bf16.mxu0 0
      %647 = vmatpush1.bf16.msra.mxu0 0
      %648 = vmatprep.subr.bf16.mxu0 0
      %649 = vmatpush1.bf16.msra.mxu0 0
      %650 = vmatprep.subr.bf16.mxu0 0
      %651 = vmatpush1.bf16.msra.mxu0 0
      %652 = vmatprep.subr.bf16.mxu0 0
      %653 = vmatpush1.bf16.msra.mxu0 0
      %654 = vmatprep.subr.bf16.mxu0 0
      %655 = vmatpush1.bf16.msra.mxu0 0
      %656 = vmatprep.subr.bf16.mxu0 0
      %657 = vmatpush1.bf16.msra.mxu0 0
      %658 = vmatprep.subr.bf16.mxu0 0
      %659 = vmatpush1.bf16.msra.mxu0 0
      %660 = vmatprep.subr.bf16.mxu0 0
      %661 = vmatpush1.bf16.msra.mxu0 0
      %662 = vmatprep.subr.bf16.mxu0 0
      %663 = vmatpush1.bf16.msra.mxu0 0
      %664 = vmatprep.subr.bf16.mxu0 0
      %665 = vmatpush1.bf16.msra.mxu0 0
      %666 = vmatprep.subr.bf16.mxu0 0
      %667 = vmatpush1.bf16.msra.mxu0 0
      %668 = vmatprep.mubr.bf16.mxu0 0
      %669 = vmatmul.mubr.bf16.gmra.mrb[0].mxu0 %v609
      %v670 = vpop.f32.mrb[0].mxu0
      %v671 = vadd.f32 %v500, %v670
      %v672 = vpop.f32.mrb[0].mxu0
      %v673 = vpop.f32.mrb[0].mxu0
      %v674 = vadd.f32 %v503, %v673
      %v675 = vpop.f32.mrb[0].mxu0
      %676 = vmatprep.mubr.bf16.mxu0 0
      %677 = vmatmul.mubr.bf16.gmra.mrb[0].mxu0 %v612
      %v678 = vpop.f32.mrb[0].mxu0
      %v679 = vadd.f32 %v508, %v678
      %v680 = vpop.f32.mrb[0].mxu0
      %v681 = vpop.f32.mrb[0].mxu0
      %v682 = vadd.f32 %v511, %v681
      %v683 = vpop.f32.mrb[0].mxu0
      %684 = vmatprep.mubr.bf16.mxu0 0
      %685 = vmatmul.mubr.bf16.gmra.mrb[0].mxu0 %v615
      %v686 = vpop.f32.mrb[0].mxu0
      %v687 = vadd.f32 %v516, %v686
      %v688 = vpop.f32.mrb[0].mxu0
      %v689 = vpop.f32.mrb[0].mxu0
      %v690 = vadd.f32 %v519, %v689
      %v691 = vpop.f32.mrb[0].mxu0
      %692 = vmatprep.mubr.bf16.mxu0 0
      %693 = vmatmul.mubr.bf16.gmra.mrb[0].mxu0 %v618
      %v694 = vpop.f32.mrb[0].mxu0
      %v695 = vadd.f32 %v524, %v694
      %v696 = vpop.f32.mrb[0].mxu0
      %v697 = vpop.f32.mrb[0].mxu0
      %v698 = vadd.f32 %v527, %v697
      %v699 = vpop.f32.mrb[0].mxu0
      %700 = vmatprep.mubr.bf16.mxu0 0
      %701 = vmatmul.mubr.bf16.gmra.mrb[0].mxu0 %v621
      %v702 = vpop.f32.mrb[0].mxu0
      %v703 = vadd.f32 %v532, %v702
      %v704 = vpop.f32.mrb[0].mxu0
      %v705 = vpop.f32.mrb[0].mxu0
      %v706 = vadd.f32 %v535, %v705
      %v707 = vpop.f32.mrb[0].mxu0
      %708 = vmatprep.mubr.bf16.mxu0 0
      %709 = vmatmul.mubr.bf16.gmra.mrb[0].mxu0 %v624
      %v710 = vpop.f32.mrb[0].mxu0
      %v711 = vadd.f32 %v540, %v710
      %v712 = vpop.f32.mrb[0].mxu0
      %v713 = vpop.f32.mrb[0].mxu0
      %v714 = vadd.f32 %v543, %v713
      %v715 = vpop.f32.mrb[0].mxu0
      %716 = vmatprep.mubr.bf16.mxu0 0
      %717 = vmatmul.mubr.bf16.gmra.mrb[0].mxu0 %v627
      %v718 = vpop.f32.mrb[0].mxu0
      %v719 = vadd.f32 %v548, %v718
      %v720 = vpop.f32.mrb[0].mxu0
      %v721 = vpop.f32.mrb[0].mxu0
      %v722 = vadd.f32 %v551, %v721
      %v723 = vpop.f32.mrb[0].mxu0
      %724 = vmatprep.mubr.bf16.mxu0 0
      %725 = vmatmul.mubr.bf16.gmra.mrb[0].mxu0 %v630
      %v726 = vpop.f32.mrb[0].mxu0
      %v727 = vadd.f32 %v556, %v726
      %v728 = vpop.f32.mrb[0].mxu0
      %v729 = vpop.f32.mrb[0].mxu0
      %v730 = vadd.f32 %v559, %v729
      %v731 = vpop.f32.mrb[0].mxu0
      %732 = vdwg.mxu0
      %v733 = vld [vmem:[%s4] sm:$0x1]
      %v735 = vlaneseq
      %v736 = vshrl.u32 %v735, 7
      %v737 = vsub.s32 0, %v736
      %v738 = vrot.slane %v733, %v737
      %v740 = vadd.f32 %v671, %v738
      %v741 = vadd.f32 %v674, %v738
      %v742 = vadd.f32 %v679, %v738
      %v743 = vadd.f32 %v682, %v738
      %v744 = vadd.f32 %v687, %v738
      %v745 = vadd.f32 %v690, %v738
      %v746 = vadd.f32 %v695, %v738
      %v747 = vadd.f32 %v698, %v738
      %v748 = vadd.f32 %v703, %v738
      %v749 = vadd.f32 %v706, %v738
      %v750 = vadd.f32 %v711, %v738
      %v751 = vadd.f32 %v714, %v738
      %v752 = vadd.f32 %v719, %v738
      %v753 = vadd.f32 %v722, %v738
      %v754 = vadd.f32 %v727, %v738
      %v755 = vadd.f32 %v730, %v738
      %v756 = vmax.f32 %v740, 0.0
      %v757 = vmax.f32 %v741, 0.0
      %v758 = vmax.f32 %v742, 0.0
      %v759 = vmax.f32 %v743, 0.0
      %v760 = vmax.f32 %v744, 0.0
      %v761 = vmax.f32 %v745, 0.0
      %v762 = vmax.f32 %v746, 0.0
      %v763 = vmax.f32 %v747, 0.0
      %v764 = vmax.f32 %v748, 0.0
      %v765 = vmax.f32 %v749, 0.0
      %v766 = vmax.f32 %v750, 0.0
      %v767 = vmax.f32 %v751, 0.0
      %v768 = vmax.f32 %v752, 0.0
      %v769 = vmax.f32 %v753, 0.0
      %v770 = vmax.f32 %v754, 0.0
      %v771 = vmax.f32 %v755, 0.0
      %v772 = vpack.c.bf16 %v757, %v756
      %v773 = vpack.c.bf16 %v759, %v758
      %v774 = vpack.c.bf16 %v761, %v760
      %v775 = vpack.c.bf16 %v763, %v762
      %v776 = vpack.c.bf16 %v765, %v764
      %v777 = vpack.c.bf16 %v767, %v766
      %v778 = vpack.c.bf16 %v769, %v768
      %v779 = vpack.c.bf16 %v771, %v770
      %v780 = vld [vmem:[%s5] sm:$0xf]
      %v781 = vld [vmem:[%s5 + $0x4] sm:$0xf]
      %v782 = vld [vmem:[%s5 + $0x8] sm:$0xf]
      %v783 = vld [vmem:[%s5 + $0xc] sm:$0xf]
      %v784 = vld [vmem:[%s6] sm:$0x1]
      %v786 = vlaneseq
      %v787 = vshrl.u32 %v786, 7
      %v788 = vsub.s32 0, %v787
      %v789 = vrot.slane %v784, %v788
      %v795 = vunpack.c.l.b16 %v780
      %v796 = vunpack.c.l.b16 %v781
      %v797 = vunpack.c.l.b16 %v782
      %v798 = vunpack.c.l.b16 %v783
      %v799 = vpack.c.b16 %v796, %v795
      %v800 = vpack.c.b16 %v798, %v797
      %vm803 = vcmask 261120
      %v805 = vsel %vm803, %v772, 0
      %v808 = vsel %vm803, %v773, 0
      %v811 = vsel %vm803, %v774, 0
      %v814 = vsel %vm803, %v775, 0
      %v817 = vsel %vm803, %v776, 0
      %v820 = vsel %vm803, %v777, 0
      %v823 = vsel %vm803, %v778, 0
      %v826 = vsel %vm803, %v779, 0
      %828 = vmatprep.subr.bf16.mxu0 0
      %829 = vmatpush1.bf16.msra.mxu0 %v799
      %830 = vmatprep.subr.bf16.mxu0 0
      %831 = vmatpush1.bf16.msra.mxu0 %v800
      %832 = vmatprep.subr.bf16.mxu0 0
      %833 = vmatpush1.bf16.msra.mxu0 0
      %834 = vmatprep.subr.bf16.mxu0 0
      %835 = vmatpush1.bf16.msra.mxu0 0
      %836 = vmatprep.subr.bf16.mxu0 0
      %837 = vmatpush1.bf16.msra.mxu0 0
      %838 = vmatprep.subr.bf16.mxu0 0
      %839 = vmatpush1.bf16.msra.mxu0 0
      %840 = vmatprep.subr.bf16.mxu0 0
      %841 = vmatpush1.bf16.msra.mxu0 0
      %842 = vmatprep.subr.bf16.mxu0 0
      %843 = vmatpush1.bf16.msra.mxu0 0
      %844 = vmatprep.subr.bf16.mxu0 0
      %845 = vmatpush1.bf16.msra.mxu0 0
      %846 = vmatprep.subr.bf16.mxu0 0
      %847 = vmatpush1.bf16.msra.mxu0 0
      %848 = vmatprep.subr.bf16.mxu0 0
      %849 = vmatpush1.bf16.msra.mxu0 0
      %850 = vmatprep.subr.bf16.mxu0 0
      %851 = vmatpush1.bf16.msra.mxu0 0
      %852 = vmatprep.subr.bf16.mxu0 0
      %853 = vmatpush1.bf16.msra.mxu0 0
      %854 = vmatprep.subr.bf16.mxu0 0
      %855 = vmatpush1.bf16.msra.mxu0 0
      %856 = vmatprep.subr.bf16.mxu0 0
      %857 = vmatpush1.bf16.msra.mxu0 0
      %858 = vmatprep.subr.bf16.mxu0 0
      %859 = vmatpush1.bf16.msra.mxu0 0
      %860 = vmatprep.mubr.bf16.mxu0 0
      %861 = vmatmul.mubr.bf16.gmra.mrb[0].mxu0 %v805
      %v862 = vpop.f32.mrb[0].mxu0
      %v863 = vadd.f32 %v789, %v862
      %v864 = vpop.f32.mrb[0].mxu0
      %v865 = vpop.f32.mrb[0].mxu0
      %v866 = vadd.f32 %v789, %v865
      %v867 = vpop.f32.mrb[0].mxu0
      %868 = vmatprep.mubr.bf16.mxu0 0
      %869 = vmatmul.mubr.bf16.gmra.mrb[0].mxu0 %v808
      %v870 = vpop.f32.mrb[0].mxu0
      %v871 = vadd.f32 %v789, %v870
      %v872 = vpop.f32.mrb[0].mxu0
      %v873 = vpop.f32.mrb[0].mxu0
      %v874 = vadd.f32 %v789, %v873
      %v875 = vpop.f32.mrb[0].mxu0
      %876 = vmatprep.mubr.bf16.mxu0 0
      %877 = vmatmul.mubr.bf16.gmra.mrb[0].mxu0 %v811
      %v878 = vpop.f32.mrb[0].mxu0
      %v879 = vadd.f32 %v789, %v878
      %v880 = vpop.f32.mrb[0].mxu0
      %v881 = vpop.f32.mrb[0].mxu0
      %v882 = vadd.f32 %v789, %v881
      %v883 = vpop.f32.mrb[0].mxu0
      %884 = vmatprep.mubr.bf16.mxu0 0
      %885 = vmatmul.mubr.bf16.gmra.mrb[0].mxu0 %v814
      %v886 = vpop.f32.mrb[0].mxu0
      %v887 = vadd.f32 %v789, %v886
      %v888 = vpop.f32.mrb[0].mxu0
      %v889 = vpop.f32.mrb[0].mxu0
      %v890 = vadd.f32 %v789, %v889
      %v891 = vpop.f32.mrb[0].mxu0
      %892 = vmatprep.mubr.bf16.mxu0 0
      %893 = vmatmul.mubr.bf16.gmra.mrb[0].mxu0 %v817
      %v894 = vpop.f32.mrb[0].mxu0
      %v895 = vadd.f32 %v789, %v894
      %v896 = vpop.f32.mrb[0].mxu0
      %v897 = vpop.f32.mrb[0].mxu0
      %v898 = vadd.f32 %v789, %v897
      %v899 = vpop.f32.mrb[0].mxu0
      %900 = vmatprep.mubr.bf16.mxu0 0
      %901 = vmatmul.mubr.bf16.gmra.mrb[0].mxu0 %v820
      %v902 = vpop.f32.mrb[0].mxu0
      %v903 = vadd.f32 %v789, %v902
      %v904 = vpop.f32.mrb[0].mxu0
      %v905 = vpop.f32.mrb[0].mxu0
      %v906 = vadd.f32 %v789, %v905
      %v907 = vpop.f32.mrb[0].mxu0
      %908 = vmatprep.mubr.bf16.mxu0 0
      %909 = vmatmul.mubr.bf16.gmra.mrb[0].mxu0 %v823
      %v910 = vpop.f32.mrb[0].mxu0
      %v911 = vadd.f32 %v789, %v910
      %v912 = vpop.f32.mrb[0].mxu0
      %v913 = vpop.f32.mrb[0].mxu0
      %v914 = vadd.f32 %v789, %v913
      %v915 = vpop.f32.mrb[0].mxu0
      %916 = vmatprep.mubr.bf16.mxu0 0
      %917 = vmatmul.mubr.bf16.gmra.mrb[0].mxu0 %v826
      %v918 = vpop.f32.mrb[0].mxu0
      %v919 = vadd.f32 %v789, %v918
      %v920 = vpop.f32.mrb[0].mxu0
      %v921 = vpop.f32.mrb[0].mxu0
      %v922 = vadd.f32 %v789, %v921
      %v923 = vpop.f32.mrb[0].mxu0
      %924 = vdwg.mxu0
      %v925 = vmax.f32 %v863, 0.0
      %v926 = vmax.f32 %v866, 0.0
      %v927 = vmax.f32 %v871, 0.0
      %v928 = vmax.f32 %v874, 0.0
      %v929 = vmax.f32 %v879, 0.0
      %v930 = vmax.f32 %v882, 0.0
      %v931 = vmax.f32 %v887, 0.0
      %v932 = vmax.f32 %v890, 0.0
      %v933 = vmax.f32 %v895, 0.0
      %v934 = vmax.f32 %v898, 0.0
      %v935 = vmax.f32 %v903, 0.0
      %v936 = vmax.f32 %v906, 0.0
      %v937 = vmax.f32 %v911, 0.0
      %v938 = vmax.f32 %v914, 0.0
      %v939 = vmax.f32 %v919, 0.0
      %v940 = vmax.f32 %v922, 0.0
      %v941 = vpack.c.bf16 %v926, %v925
      %v942 = vpack.c.bf16 %v928, %v927
      %v943 = vpack.c.bf16 %v930, %v929
      %v944 = vpack.c.bf16 %v932, %v931
      %v945 = vpack.c.bf16 %v934, %v933
      %v946 = vpack.c.bf16 %v936, %v935
      %v947 = vpack.c.bf16 %v938, %v937
      %v948 = vpack.c.bf16 %v940, %v939
      %v949 = vld [vmem:[%s7] sm:$0xf]
      %v950 = vld [vmem:[%s7 + $0x4] sm:$0xf]
      %v951 = vld [vmem:[%s7 + $0x8] sm:$0xf]
      %v952 = vld [vmem:[%s7 + $0xc] sm:$0xf]
      %v953 = vld [vmem:[#allocation2] sm:$0x1]
      %v955 = vlaneseq
      %v956 = vshrl.u32 %v955, 7
      %v957 = vsub.s32 0, %v956
      %v958 = vrot.slane %v953, %v957
      %v964 = vunpack.c.l.b16 %v949
      %v965 = vunpack.c.l.b16 %v950
      %v966 = vunpack.c.l.b16 %v951
      %v967 = vunpack.c.l.b16 %v952
      %v968 = vpack.c.b16 %v965, %v964
      %v969 = vpack.c.b16 %v967, %v966
      %v973 = vsel %vm803, %v941, 0
      %v976 = vsel %vm803, %v942, 0
      %v979 = vsel %vm803, %v943, 0
      %v982 = vsel %vm803, %v944, 0
      %v985 = vsel %vm803, %v945, 0
      %v988 = vsel %vm803, %v946, 0
      %v991 = vsel %vm803, %v947, 0
      %v994 = vsel %vm803, %v948, 0
      %996 = vmatprep.subr.bf16.mxu0 0
      %997 = vmatpush1.bf16.msra.mxu0 %v968
      %998 = vmatprep.subr.bf16.mxu0 0
      %999 = vmatpush1.bf16.msra.mxu0 %v969
      %1000 = vmatprep.subr.bf16.mxu0 0
      %1001 = vmatpush1.bf16.msra.mxu0 0
      %1002 = vmatprep.subr.bf16.mxu0 0
      %1003 = vmatpush1.bf16.msra.mxu0 0
      %1004 = vmatprep.subr.bf16.mxu0 0
      %1005 = vmatpush1.bf16.msra.mxu0 0
      %1006 = vmatprep.subr.bf16.mxu0 0
      %1007 = vmatpush1.bf16.msra.mxu0 0
      %1008 = vmatprep.subr.bf16.mxu0 0
      %1009 = vmatpush1.bf16.msra.mxu0 0
      %1010 = vmatprep.subr.bf16.mxu0 0
      %1011 = vmatpush1.bf16.msra.mxu0 0
      %1012 = vmatprep.subr.bf16.mxu0 0
      %1013 = vmatpush1.bf16.msra.mxu0 0
      %1014 = vmatprep.subr.bf16.mxu0 0
      %1015 = vmatpush1.bf16.msra.mxu0 0
      %1016 = vmatprep.subr.bf16.mxu0 0
      %1017 = vmatpush1.bf16.msra.mxu0 0
      %1018 = vmatprep.subr.bf16.mxu0 0
      %1019 = vmatpush1.bf16.msra.mxu0 0
      %1020 = vmatprep.subr.bf16.mxu0 0
      %1021 = vmatpush1.bf16.msra.mxu0 0
      %1022 = vmatprep.subr.bf16.mxu0 0
      %1023 = vmatpush1.bf16.msra.mxu0 0
      %1024 = vmatprep.subr.bf16.mxu0 0
      %1025 = vmatpush1.bf16.msra.mxu0 0
      %1026 = vmatprep.subr.bf16.mxu0 0
      %1027 = vmatpush1.bf16.msra.mxu0 0
      %1028 = vmatprep.mubr.bf16.mxu0 0
      %1029 = vmatmul.mubr.bf16.gmra.mrb[0].mxu0 %v973
      %v1030 = vpop.f32.mrb[0].mxu0
      %v1031 = vadd.f32 %v958, %v1030
      %v1032 = vpop.f32.mrb[0].mxu0
      %v1033 = vpop.f32.mrb[0].mxu0
      %v1034 = vadd.f32 %v958, %v1033
      %v1035 = vpop.f32.mrb[0].mxu0
      %1036 = vmatprep.mubr.bf16.mxu0 0
      %1037 = vmatmul.mubr.bf16.gmra.mrb[0].mxu0 %v976
      %v1038 = vpop.f32.mrb[0].mxu0
      %v1039 = vadd.f32 %v958, %v1038
      %v1040 = vpop.f32.mrb[0].mxu0
      %v1041 = vpop.f32.mrb[0].mxu0
      %v1042 = vadd.f32 %v958, %v1041
      %v1043 = vpop.f32.mrb[0].mxu0
      %1044 = vmatprep.mubr.bf16.mxu0 0
      %1045 = vmatmul.mubr.bf16.gmra.mrb[0].mxu0 %v979
      %v1046 = vpop.f32.mrb[0].mxu0
      %v1047 = vadd.f32 %v958, %v1046
      %v1048 = vpop.f32.mrb[0].mxu0
      %v1049 = vpop.f32.mrb[0].mxu0
      %v1050 = vadd.f32 %v958, %v1049
      %v1051 = vpop.f32.mrb[0].mxu0
      %1052 = vmatprep.mubr.bf16.mxu0 0
      %1053 = vmatmul.mubr.bf16.gmra.mrb[0].mxu0 %v982
      %v1054 = vpop.f32.mrb[0].mxu0
      %v1055 = vadd.f32 %v958, %v1054
      %v1056 = vpop.f32.mrb[0].mxu0
      %v1057 = vpop.f32.mrb[0].mxu0
      %v1058 = vadd.f32 %v958, %v1057
      %v1059 = vpop.f32.mrb[0].mxu0
      %1060 = vmatprep.mubr.bf16.mxu0 0
      %1061 = vmatmul.mubr.bf16.gmra.mrb[0].mxu0 %v985
      %v1062 = vpop.f32.mrb[0].mxu0
      %v1063 = vadd.f32 %v958, %v1062
      %v1064 = vpop.f32.mrb[0].mxu0
      %v1065 = vpop.f32.mrb[0].mxu0
      %v1066 = vadd.f32 %v958, %v1065
      %v1067 = vpop.f32.mrb[0].mxu0
      %1068 = vmatprep.mubr.bf16.mxu0 0
      %1069 = vmatmul.mubr.bf16.gmra.mrb[0].mxu0 %v988
      %v1070 = vpop.f32.mrb[0].mxu0
      %v1071 = vadd.f32 %v958, %v1070
      %v1072 = vpop.f32.mrb[0].mxu0
      %v1073 = vpop.f32.mrb[0].mxu0
      %v1074 = vadd.f32 %v958, %v1073
      %v1075 = vpop.f32.mrb[0].mxu0
      %1076 = vmatprep.mubr.bf16.mxu0 0
      %1077 = vmatmul.mubr.bf16.gmra.mrb[0].mxu0 %v991
      %v1078 = vpop.f32.mrb[0].mxu0
      %v1079 = vadd.f32 %v958, %v1078
      %v1080 = vpop.f32.mrb[0].mxu0
      %v1081 = vpop.f32.mrb[0].mxu0
      %v1082 = vadd.f32 %v958, %v1081
      %v1083 = vpop.f32.mrb[0].mxu0
      %1084 = vmatprep.mubr.bf16.mxu0 0
      %1085 = vmatmul.mubr.bf16.gmra.mrb[0].mxu0 %v994
      %v1086 = vpop.f32.mrb[0].mxu0
      %v1087 = vadd.f32 %v958, %v1086
      %v1088 = vpop.f32.mrb[0].mxu0
      %v1089 = vpop.f32.mrb[0].mxu0
      %v1090 = vadd.f32 %v958, %v1089
      %v1091 = vpop.f32.mrb[0].mxu0
      %1092 = vdwg.mxu0
      %vm1093 = vcmask 7168
      %1094 = vst.msk [vmem:[%s358] sm:$0xff] %vm1093, %v1031
      %1095 = vst.msk [vmem:[%s358 + $0x8] sm:$0xff] %vm1093, %v1034
      %1096 = vst.msk [vmem:[%s358 + $0x10] sm:$0xff] %vm1093, %v1039
      %1097 = vst.msk [vmem:[%s358 + $0x18] sm:$0xff] %vm1093, %v1042
      %1098 = vst.msk [vmem:[%s358 + $0x20] sm:$0xff] %vm1093, %v1047
      %1099 = vst.msk [vmem:[%s358 + $0x28] sm:$0xff] %vm1093, %v1050
      %1100 = vst.msk [vmem:[%s358 + $0x30] sm:$0xff] %vm1093, %v1055
      %1101 = vst.msk [vmem:[%s358 + $0x38] sm:$0xff] %vm1093, %v1058
      %1102 = vst.msk [vmem:[%s358 + $0x40] sm:$0xff] %vm1093, %v1063
      %1103 = vst.msk [vmem:[%s358 + $0x48] sm:$0xff] %vm1093, %v1066
      %1104 = vst.msk [vmem:[%s358 + $0x50] sm:$0xff] %vm1093, %v1071
      %1105 = vst.msk [vmem:[%s358 + $0x58] sm:$0xff] %vm1093, %v1074
      %1106 = vst.msk [vmem:[%s358 + $0x60] sm:$0xff] %vm1093, %v1079
      %1107 = vst.msk [vmem:[%s358 + $0x68] sm:$0xff] %vm1093, %v1082
      %1108 = vst.msk [vmem:[%s358 + $0x70] sm:$0xff] %vm1093, %v1087
      %1109 = vst.msk [vmem:[%s358 + $0x78] sm:$0xff] %vm1093, %v1090
      %s1110 = smul.u32 16, %s22
      %p1111 = scmp.lt.s32.totalorder %s1110, 31
      %s1112 = scalar_select %p1111, %s1110, 31
      %s1113 = smul.addr %s1112, 8
      %s1114 = scalar_lea.vmem %s9, %s1113
      // Predicated region
      $region57: #{tpu_custom_call.1} parent=55 // pred_check
        %p1115 = pneg %p239
      $region58: #{tpu_custom_call.1} parent=55 // pred_check_branch
        %1117 = sbr.rel (%p1115) target = $region60
      $region59: #{tpu_custom_call.1} parent=55 // pred_region
        %s1118 = smul.u32 16, %s22
      $region60: #{tpu_custom_call.1} parent=55 // pred_fallthru
        _
    $region56: #{tpu_custom_call.1} parent=5 // pred_fallthru
      _
    %p1119 = scmp.le.s32.totalorder 2, %s17
    // Predicated region
    $region61: #{tpu_custom_call.1} parent=5 // pred_check
      %p1120 = pneg %p1119
    $region62: #{tpu_custom_call.1} parent=5 // pred_check_branch
      %1122 = sbr.rel (%p1120) target = $region64
    $region63: #{tpu_custom_call.1} parent=5 // pred_region
      %s1123 = ssub.s32 %s17, 2
      // Predicated region
      $region65: #{tpu_custom_call.1} parent=63 // pred_check
        %p1124 = pneg %p245
      $region66: #{tpu_custom_call.1} parent=63 // pred_check_branch
        %1126 = sbr.rel (%p1124) target = $region68
      $region67: #{tpu_custom_call.1} parent=63 // pred_region
        %s1127 = smul.u32 16, %s23
        %p1128 = scmp.lt.s32.totalorder %s1127, 31
        %s1129 = scalar_select %p1128, %s1127, 31
        %s1130 = smul.addr %s1129, 8
        %s1131 = scalar_lea.vmem %s9, %s1130
      $region68: #{tpu_custom_call.1} parent=63 // pred_fallthru
        _
    $region64: #{tpu_custom_call.1} parent=5 // pred_fallthru
      _
  $region6: #{tpu_custom_call.1} parent=0 // loop_footer
    %s21 = sadd.s32 1, %s17
  $region7: #{tpu_custom_call.1} parent=0 // loop_footer_branch
    %16 = sbr.rel target = $region3
  $region8: #{tpu_custom_call.1} parent=0 // loop_exit
    _

</llo_original>
